<compile_context>
chip_gen: v5e
topology: v5e:2x2
jax: 0.10.0
libtpu: 0.0.40
codegen_flags: <defaults>
</compile_context>

<pallas_src>
import math

import jax
import jax.numpy as jnp
from jax import lax
from jax.experimental import pallas as pl
from jax.experimental.pallas import tpu as pltpu


def _lstm_rec_kernel(gx_ref, whh_ref, y_ref, h_scr, c_scr):
    # gx_ref : (1, TB, B, 4H)   pre-projected gates (x @ W_ih^T + b_ih + b_hh)
    #                           for one block of TB timesteps of one direction.
    # whh_ref: (num_dir, H, 4H) recurrent weights, VMEM-resident (untiled).
    # y_ref  : (1, TB, B, H)    hidden states written for this time block.
    # h_scr, c_scr : (B, H)     recurrent carries, persist across the time grid.
    d = pl.program_id(0)      # direction (parallel axis)
    t_blk = pl.program_id(1)  # time block (sequential / "arbitrary" axis)

    @pl.when(t_blk == 0)
    def _():
        h_scr[...] = jnp.zeros_like(h_scr)
        c_scr[...] = jnp.zeros_like(c_scr)

    H = h_scr.shape[1]
    TB = gx_ref.shape[1]
    whh = whh_ref[d]  # (H, 4H)

    def step(i, carry):
        h, c = carry
        gates = gx_ref[0, i] + jnp.dot(h, whh,
                                       preferred_element_type=jnp.float32)
        # Full-slab transcendentals on the EUP slot, then static lane slices.
        # PyTorch gate order: i, f, g, o.
        sig = jax.nn.sigmoid(gates)
        tan = jnp.tanh(gates)
        i_g = sig[:, 0 * H:1 * H]
        f_g = sig[:, 1 * H:2 * H]
        g_g = tan[:, 2 * H:3 * H]
        o_g = sig[:, 3 * H:4 * H]
        c_new = f_g * c + i_g * g_g
        h_new = o_g * jnp.tanh(c_new)
        y_ref[0, i] = h_new.astype(y_ref.dtype)
        return (h_new, c_new)

    # h/c stay in vregs across the unrolled time block; write back once.
    h_fin, c_fin = lax.fori_loop(0, TB, step, (h_scr[...], c_scr[...]),
                                 unroll=True)
    h_scr[...] = h_fin
    c_scr[...] = c_fin


def _lstm_layer(x_tbd, dir_params, hidden_dim, time_block=8):
    """One LSTM layer (all directions) over a time-major (T, B, Din) input.

    Returns (T, B, H * num_directions).
    """
    T, B, _ = x_tbd.shape
    H = hidden_dim
    num_dir = len(dir_params)

    # --- Hoisted input projection: one big matmul per direction (XLA) -------
    gx_list, whh_list = [], []
    for d, (w_ih, w_hh, b_ih, b_hh) in enumerate(dir_params):
        # x @ W_ih^T + (b_ih + b_hh)  ->  (T, B, 4H)
        gx = jnp.einsum("tbd,gd->tbg", x_tbd, w_ih,
                        preferred_element_type=jnp.float32)
        gx = gx + (b_ih + b_hh).reshape(1, 1, 4 * H)
        if d == 1:
            # Reverse direction: flip time, run the recurrence forward, and
            # flip the outputs back afterwards.
            gx = gx[::-1]
        gx_list.append(gx)
        whh_list.append(jnp.transpose(w_hh))  # (H, 4H)

    gates = jnp.stack(gx_list, axis=0)  # (num_dir, T, B, 4H)
    whh = jnp.stack(whh_list, axis=0)   # (num_dir, H, 4H)

    # --- Time blocking (pad T up to a multiple of the block) ----------------
    TB = min(time_block, T)
    n_blk = -(-T // TB)
    T_pad = n_blk * TB
    if T_pad != T:
        gates = jnp.pad(gates, ((0, 0), (0, T_pad - T), (0, 0), (0, 0)))

    y = pl.pallas_call(
        _lstm_rec_kernel,
        out_shape=jax.ShapeDtypeStruct((num_dir, T_pad, B, H), jnp.float32),
        grid_spec=pltpu.PrefetchScalarGridSpec(
            num_scalar_prefetch=0,
            grid=(num_dir, n_blk),
            in_specs=[
                # Pre-gates: pipelined (TB, B, 4H) blocks per direction.
                pl.BlockSpec((1, TB, B, 4 * H), lambda d, t: (d, t, 0, 0)),
                # Recurrent weights: whole array resident in VMEM, no
                # pipeline double-buffering.
                pl.BlockSpec(memory_space=pltpu.MemorySpace.VMEM),
            ],
            out_specs=pl.BlockSpec((1, TB, B, H), lambda d, t: (d, t, 0, 0)),
            scratch_shapes=[
                pltpu.VMEM((B, H), jnp.float32),  # h carry
                pltpu.VMEM((B, H), jnp.float32),  # c carry
            ],
        ),
        compiler_params=pltpu.CompilerParams(
            # Directions are independent (2 TCs on v7x); time is a recurrence.
            dimension_semantics=("parallel", "arbitrary"),
        ),
    )(gates, whh)

    outs = []
    for d in range(num_dir):
        yd = y[d, :T]
        if d == 1:
            yd = yd[::-1]
        outs.append(yd)
    return jnp.concatenate(outs, axis=-1) if num_dir > 1 else outs[0]


class LSTM3Pallas:
    """Pallas equivalent of LSTM3 (nn.LSTM, batch_first=True, hidden_state=None)."""

    def __init__(self, latent_dim, num_layers, hidden_dim, bidirectional, key,
                 time_block=8):
        self.latent_dim = latent_dim
        self.num_layers = num_layers
        self.hidden_dim = hidden_dim
        self.bidirectional = bidirectional
        self.num_directions = 2 if bidirectional else 1
        self.time_block = time_block

        k = 1.0 / math.sqrt(hidden_dim)  # PyTorch nn.LSTM default init bound
        self.params = []  # params[layer][direction] = (w_ih, w_hh, b_ih, b_hh)
        for layer in range(num_layers):
            in_dim = latent_dim if layer == 0 else hidden_dim * self.num_directions
            dirs = []
            for _ in range(self.num_directions):
                key, k1, k2, k3, k4 = jax.random.split(key, 5)
                w_ih = jax.random.uniform(k1, (4 * hidden_dim, in_dim),
                                          jnp.float32, -k, k)
                w_hh = jax.random.uniform(k2, (4 * hidden_dim, hidden_dim),
                                          jnp.float32, -k, k)
                b_ih = jax.random.uniform(k3, (4 * hidden_dim,), jnp.float32, -k, k)
                b_hh = jax.random.uniform(k4, (4 * hidden_dim,), jnp.float32, -k, k)
                dirs.append((w_ih, w_hh, b_ih, b_hh))
            self.params.append(dirs)

    def __call__(self, x_btd):
        # x_btd: (B, T, latent_dim) batch-first, as in PyTorch forward()
        h = jnp.transpose(x_btd, (1, 0, 2))  # -> (T, B, D) time-major
        for layer in range(self.num_layers):
            h = _lstm_layer(h, self.params[layer], self.hidden_dim,
                            self.time_block)
        return jnp.transpose(h, (1, 0, 2))  # (B, T, H * num_directions)


def _ref_lstm(x_btd, params, hidden_dim, num_layers, bidirectional):
    """Pure-JAX reference matching torch.nn.LSTM(batch_first=True) semantics."""
    B, T, _ = x_btd.shape
    num_dir = 2 if bidirectional else 1
    H = hidden_dim
    h_seq = x_btd
    for layer in range(num_layers):
        outs = []
        for d in range(num_dir):
            w_ih, w_hh, b_ih, b_hh = params[layer][d]
            h = jnp.zeros((B, H), jnp.float32)
            c = jnp.zeros((B, H), jnp.float32)
            ys = [None] * T
            ts = range(T) if d == 0 else range(T - 1, -1, -1)
            for t in ts:
                g = h_seq[:, t, :] @ w_ih.T + b_ih + h @ w_hh.T + b_hh
                i_g = jax.nn.sigmoid(g[:, 0 * H:1 * H])
                f_g = jax.nn.sigmoid(g[:, 1 * H:2 * H])
                g_g = jnp.tanh(g[:, 2 * H:3 * H])
                o_g = jax.nn.sigmoid(g[:, 3 * H:4 * H])
                c = f_g * c + i_g * g_g
                h = o_g * jnp.tanh(c)
                ys[t] = h
            outs.append(jnp.stack(ys, axis=1))
        h_seq = jnp.concatenate(outs, axis=-1) if num_dir > 1 else outs[0]
    return h_seq


if __name__ == "__main__":
    # Small config consistent with LSTM3(latent_dim, num_layers, hidden_dim, bidirectional)
    latent_dim, num_layers, hidden_dim, bidirectional = 32, 2, 32, True
    B, T = 2, 12  # T=12 with time_block=8 exercises multi-block + padding path

    key = jax.random.PRNGKey(0)
    key, xkey, pkey = jax.random.split(key, 3)
    x = jax.random.normal(xkey, (B, T, latent_dim), jnp.float32)

    model = LSTM3Pallas(latent_dim, num_layers, hidden_dim, bidirectional, pkey,
                        time_block=8)

    out = jax.block_until_ready(model(x))

    ref = _ref_lstm(x, model.params, hidden_dim, num_layers, bidirectional)
    assert out.shape == (B, T, hidden_dim * (2 if bidirectional else 1)), out.shape
    assert jnp.allclose(out, ref, atol=1e-4, rtol=1e-4), "mismatch vs reference"

    print("KERNEL_OK")
</pallas_src>

<mosaic_0001>
module attributes {stable_mosaic.version = 11 : i64} {
  func.func @_lstm_rec_kernel(%arg0: i32, %arg1: i32, %arg2: memref<1x8x2x128xf32, #tpu.memory_space<vmem>>, %arg3: memref<2x32x128xf32, #tpu.memory_space<vmem>>, %arg4: memref<1x8x2x32xf32, #tpu.memory_space<vmem>>, %arg5: memref<2x32xf32, #tpu.memory_space<vmem>>, %arg6: memref<2x32xf32, #tpu.memory_space<vmem>>) attributes {dimension_semantics = [#tpu.dimension_semantics<parallel>, #tpu.dimension_semantics<arbitrary>], iteration_bounds = array<i64: 2, 2>, scalar_prefetch = 0 : i64, scratch_operands = 2 : i64, tpu.core_type = #tpu.core_type<tc>, window_params = [{transform_indices = @transform_0, window_bounds = array<i64: 1, 8, 2, 128>}, {pipeline_mode = #tpu.pipeline_mode<synchronous>, transform_indices = @transform_1, window_bounds = array<i64: 2, 32, 128>}, {transform_indices = @transform_2, window_bounds = array<i64: 1, 8, 2, 32>}]} {
    %c0_i32 = arith.constant 0 : i32
    %0 = arith.cmpi eq, %arg1, %c0_i32 : i32
    %1 = arith.extui %0 : i1 to i32
    %c0_i32_0 = arith.constant 0 : i32
    %2 = arith.cmpi ne, %1, %c0_i32_0 : i32
    scf.if %2 {
      %cst_74 = arith.constant 0.000000e+00 : f32
      %202 = vector.broadcast %cst_74 : f32 to vector<2x32xf32>
      %c0_75 = arith.constant 0 : index
      %c0_76 = arith.constant 0 : index
      %203 = vector.load %arg5[%c0_75, %c0_76] : memref<2x32xf32, #tpu.memory_space<vmem>>, vector<2x32xf32>
      tpu.vector_store %arg5[%c0_75, %c0_76], %202 {strides = array<i32>} : memref<2x32xf32, #tpu.memory_space<vmem>>, vector<2x32xf32>,
      %cst_77 = arith.constant 0.000000e+00 : f32
      %204 = vector.broadcast %cst_77 : f32 to vector<2x32xf32>
      %c0_78 = arith.constant 0 : index
      %c0_79 = arith.constant 0 : index
      %205 = vector.load %arg6[%c0_78, %c0_79] : memref<2x32xf32, #tpu.memory_space<vmem>>, vector<2x32xf32>
      tpu.vector_store %arg6[%c0_78, %c0_79], %204 {strides = array<i32>} : memref<2x32xf32, #tpu.memory_space<vmem>>, vector<2x32xf32>,
    } else {
    }
    %3 = arith.index_cast %arg0 : i32 to index
    %c0 = arith.constant 0 : index
    %c0_1 = arith.constant 0 : index
    %4 = vector.load %arg3[%3, %c0, %c0_1] : memref<2x32x128xf32, #tpu.memory_space<vmem>>, vector<1x32x128xf32>
    %5 = vector.shape_cast %4 : vector<1x32x128xf32> to vector<32x128xf32>
    %c0_2 = arith.constant 0 : index
    %c0_3 = arith.constant 0 : index
    %6 = vector.load %arg5[%c0_2, %c0_3] : memref<2x32xf32, #tpu.memory_space<vmem>>, vector<2x32xf32>
    %c0_4 = arith.constant 0 : index
    %c0_5 = arith.constant 0 : index
    %7 = vector.load %arg6[%c0_4, %c0_5] : memref<2x32xf32, #tpu.memory_space<vmem>>, vector<2x32xf32>
    %c0_i32_6 = arith.constant 0 : i32
    %c0_7 = arith.constant 0 : index
    %8 = arith.index_cast %c0_i32_6 : i32 to index
    %c0_8 = arith.constant 0 : index
    %c0_9 = arith.constant 0 : index
    %9 = vector.load %arg2[%c0_7, %8, %c0_8, %c0_9] : memref<1x8x2x128xf32, #tpu.memory_space<vmem>>, vector<1x1x2x128xf32>
    %10 = vector.shape_cast %9 : vector<1x1x2x128xf32> to vector<2x128xf32>
    %cst = arith.constant dense<0.000000e+00> : vector<2x128xf32>
    %11 = tpu.matmul %6, %5, %cst {dimension_numbers = #tpu.dot_dimension_numbers<[1], [0], [0], [1], [0, 0, 1, 1], [], []>} : vector<2x32xf32>, vector<32x128xf32>, vector<2x128xf32> -> vector<2x128xf32>
    %12 = arith.addf %10, %11 : vector<2x128xf32>
    %13 = arith.negf %12 : vector<2x128xf32>
    %14 = math.exp %13 : vector<2x128xf32>
    %cst_10 = arith.constant 1.000000e+00 : f32
    %15 = vector.broadcast %cst_10 : f32 to vector<2x128xf32>
    %16 = arith.addf %15, %14 : vector<2x128xf32>
    %17 = arith.divf %15, %16 : vector<2x128xf32>
    %18 = math.tanh %12 : vector<2x128xf32>
    %19 = vector.extract_strided_slice %17 {offsets = [0, 0], sizes = [2, 32], strides = [1, 1]} : vector<2x128xf32> to vector<2x32xf32>
    %20 = vector.extract_strided_slice %17 {offsets = [0, 32], sizes = [2, 32], strides = [1, 1]} : vector<2x128xf32> to vector<2x32xf32>
    %21 = vector.extract_strided_slice %18 {offsets = [0, 64], sizes = [2, 32], strides = [1, 1]} : vector<2x128xf32> to vector<2x32xf32>
    %22 = vector.extract_strided_slice %17 {offsets = [0, 96], sizes = [2, 32], strides = [1, 1]} : vector<2x128xf32> to vector<2x32xf32>
    %23 = arith.mulf %20, %7 : vector<2x32xf32>
    %24 = arith.mulf %19, %21 : vector<2x32xf32>
    %25 = arith.addf %23, %24 : vector<2x32xf32>
    %26 = math.tanh %25 : vector<2x32xf32>
    %27 = arith.mulf %22, %26 : vector<2x32xf32>
    %c0_11 = arith.constant 0 : index
    %28 = arith.index_cast %c0_i32_6 : i32 to index
    %c0_12 = arith.constant 0 : index
    %c0_13 = arith.constant 0 : index
    %29 = vector.load %arg4[%c0_11, %28, %c0_12, %c0_13] : memref<1x8x2x32xf32, #tpu.memory_space<vmem>>, vector<1x1x2x32xf32>
    %30 = vector.shape_cast %29 : vector<1x1x2x32xf32> to vector<2x32xf32>
    %31 = vector.shape_cast %27 : vector<2x32xf32> to vector<1x1x2x32xf32>
    tpu.vector_store %arg4[%c0_11, %28, %c0_12, %c0_13], %31 {strides = array<i32>} : memref<1x8x2x32xf32, #tpu.memory_space<vmem>>, vector<1x1x2x32xf32>,
    %c1_i32 = arith.constant 1 : i32
    %c0_14 = arith.constant 0 : index
    %32 = arith.index_cast %c1_i32 : i32 to index
    %c0_15 = arith.constant 0 : index
    %c0_16 = arith.constant 0 : index
    %33 = vector.load %arg2[%c0_14, %32, %c0_15, %c0_16] : memref<1x8x2x128xf32, #tpu.memory_space<vmem>>, vector<1x1x2x128xf32>
    %34 = vector.shape_cast %33 : vector<1x1x2x128xf32> to vector<2x128xf32>
    %cst_17 = arith.constant dense<0.000000e+00> : vector<2x128xf32>
    %35 = tpu.matmul %27, %5, %cst_17 {dimension_numbers = #tpu.dot_dimension_numbers<[1], [0], [0], [1], [0, 0, 1, 1], [], []>} : vector<2x32xf32>, vector<32x128xf32>, vector<2x128xf32> -> vector<2x128xf32>
    %36 = arith.addf %34, %35 : vector<2x128xf32>
    %37 = arith.negf %36 : vector<2x128xf32>
    %38 = math.exp %37 : vector<2x128xf32>
    %cst_18 = arith.constant 1.000000e+00 : f32
    %39 = vector.broadcast %cst_18 : f32 to vector<2x128xf32>
    %40 = arith.addf %39, %38 : vector<2x128xf32>
    %41 = arith.divf %39, %40 : vector<2x128xf32>
    %42 = math.tanh %36 : vector<2x128xf32>
    %43 = vector.extract_strided_slice %41 {offsets = [0, 0], sizes = [2, 32], strides = [1, 1]} : vector<2x128xf32> to vector<2x32xf32>
    %44 = vector.extract_strided_slice %41 {offsets = [0, 32], sizes = [2, 32], strides = [1, 1]} : vector<2x128xf32> to vector<2x32xf32>
    %45 = vector.extract_strided_slice %42 {offsets = [0, 64], sizes = [2, 32], strides = [1, 1]} : vector<2x128xf32> to vector<2x32xf32>
    %46 = vector.extract_strided_slice %41 {offsets = [0, 96], sizes = [2, 32], strides = [1, 1]} : vector<2x128xf32> to vector<2x32xf32>
    %47 = arith.mulf %44, %25 : vector<2x32xf32>
    %48 = arith.mulf %43, %45 : vector<2x32xf32>
    %49 = arith.addf %47, %48 : vector<2x32xf32>
    %50 = math.tanh %49 : vector<2x32xf32>
    %51 = arith.mulf %46, %50 : vector<2x32xf32>
    %c0_19 = arith.constant 0 : index
    %52 = arith.index_cast %c1_i32 : i32 to index
    %c0_20 = arith.constant 0 : index
    %c0_21 = arith.constant 0 : index
    %53 = vector.load %arg4[%c0_19, %52, %c0_20, %c0_21] : memref<1x8x2x32xf32, #tpu.memory_space<vmem>>, vector<1x1x2x32xf32>
    %54 = vector.shape_cast %53 : vector<1x1x2x32xf32> to vector<2x32xf32>
    %55 = vector.shape_cast %51 : vector<2x32xf32> to vector<1x1x2x32xf32>
    tpu.vector_store %arg4[%c0_19, %52, %c0_20, %c0_21], %55 {strides = array<i32>} : memref<1x8x2x32xf32, #tpu.memory_space<vmem>>, vector<1x1x2x32xf32>,
    %c2_i32 = arith.constant 2 : i32
    %c0_22 = arith.constant 0 : index
    %56 = arith.index_cast %c2_i32 : i32 to index
    %c0_23 = arith.constant 0 : index
    %c0_24 = arith.constant 0 : index
    %57 = vector.load %arg2[%c0_22, %56, %c0_23, %c0_24] : memref<1x8x2x128xf32, #tpu.memory_space<vmem>>, vector<1x1x2x128xf32>
    %58 = vector.shape_cast %57 : vector<1x1x2x128xf32> to vector<2x128xf32>
    %cst_25 = arith.constant dense<0.000000e+00> : vector<2x128xf32>
    %59 = tpu.matmul %51, %5, %cst_25 {dimension_numbers = #tpu.dot_dimension_numbers<[1], [0], [0], [1], [0, 0, 1, 1], [], []>} : vector<2x32xf32>, vector<32x128xf32>, vector<2x128xf32> -> vector<2x128xf32>
    %60 = arith.addf %58, %59 : vector<2x128xf32>
    %61 = arith.negf %60 : vector<2x128xf32>
    %62 = math.exp %61 : vector<2x128xf32>
    %cst_26 = arith.constant 1.000000e+00 : f32
    %63 = vector.broadcast %cst_26 : f32 to vector<2x128xf32>
    %64 = arith.addf %63, %62 : vector<2x128xf32>
    %65 = arith.divf %63, %64 : vector<2x128xf32>
    %66 = math.tanh %60 : vector<2x128xf32>
    %67 = vector.extract_strided_slice %65 {offsets = [0, 0], sizes = [2, 32], strides = [1, 1]} : vector<2x128xf32> to vector<2x32xf32>
    %68 = vector.extract_strided_slice %65 {offsets = [0, 32], sizes = [2, 32], strides = [1, 1]} : vector<2x128xf32> to vector<2x32xf32>
    %69 = vector.extract_strided_slice %66 {offsets = [0, 64], sizes = [2, 32], strides = [1, 1]} : vector<2x128xf32> to vector<2x32xf32>
    %70 = vector.extract_strided_slice %65 {offsets = [0, 96], sizes = [2, 32], strides = [1, 1]} : vector<2x128xf32> to vector<2x32xf32>
    %71 = arith.mulf %68, %49 : vector<2x32xf32>
    %72 = arith.mulf %67, %69 : vector<2x32xf32>
    %73 = arith.addf %71, %72 : vector<2x32xf32>
    %74 = math.tanh %73 : vector<2x32xf32>
    %75 = arith.mulf %70, %74 : vector<2x32xf32>
    %c0_27 = arith.constant 0 : index
    %76 = arith.index_cast %c2_i32 : i32 to index
    %c0_28 = arith.constant 0 : index
    %c0_29 = arith.constant 0 : index
    %77 = vector.load %arg4[%c0_27, %76, %c0_28, %c0_29] : memref<1x8x2x32xf32, #tpu.memory_space<vmem>>, vector<1x1x2x32xf32>
    %78 = vector.shape_cast %77 : vector<1x1x2x32xf32> to vector<2x32xf32>
    %79 = vector.shape_cast %75 : vector<2x32xf32> to vector<1x1x2x32xf32>
    tpu.vector_store %arg4[%c0_27, %76, %c0_28, %c0_29], %79 {strides = array<i32>} : memref<1x8x2x32xf32, #tpu.memory_space<vmem>>, vector<1x1x2x32xf32>,
    %c3_i32 = arith.constant 3 : i32
    %c0_30 = arith.constant 0 : index
    %80 = arith.index_cast %c3_i32 : i32 to index
    %c0_31 = arith.constant 0 : index
    %c0_32 = arith.constant 0 : index
    %81 = vector.load %arg2[%c0_30, %80, %c0_31, %c0_32] : memref<1x8x2x128xf32, #tpu.memory_space<vmem>>, vector<1x1x2x128xf32>
    %82 = vector.shape_cast %81 : vector<1x1x2x128xf32> to vector<2x128xf32>
    %cst_33 = arith.constant dense<0.000000e+00> : vector<2x128xf32>
    %83 = tpu.matmul %75, %5, %cst_33 {dimension_numbers = #tpu.dot_dimension_numbers<[1], [0], [0], [1], [0, 0, 1, 1], [], []>} : vector<2x32xf32>, vector<32x128xf32>, vector<2x128xf32> -> vector<2x128xf32>
    %84 = arith.addf %82, %83 : vector<2x128xf32>
    %85 = arith.negf %84 : vector<2x128xf32>
    %86 = math.exp %85 : vector<2x128xf32>
    %cst_34 = arith.constant 1.000000e+00 : f32
    %87 = vector.broadcast %cst_34 : f32 to vector<2x128xf32>
    %88 = arith.addf %87, %86 : vector<2x128xf32>
    %89 = arith.divf %87, %88 : vector<2x128xf32>
    %90 = math.tanh %84 : vector<2x128xf32>
    %91 = vector.extract_strided_slice %89 {offsets = [0, 0], sizes = [2, 32], strides = [1, 1]} : vector<2x128xf32> to vector<2x32xf32>
    %92 = vector.extract_strided_slice %89 {offsets = [0, 32], sizes = [2, 32], strides = [1, 1]} : vector<2x128xf32> to vector<2x32xf32>
    %93 = vector.extract_strided_slice %90 {offsets = [0, 64], sizes = [2, 32], strides = [1, 1]} : vector<2x128xf32> to vector<2x32xf32>
    %94 = vector.extract_strided_slice %89 {offsets = [0, 96], sizes = [2, 32], strides = [1, 1]} : vector<2x128xf32> to vector<2x32xf32>
    %95 = arith.mulf %92, %73 : vector<2x32xf32>
    %96 = arith.mulf %91, %93 : vector<2x32xf32>
    %97 = arith.addf %95, %96 : vector<2x32xf32>
    %98 = math.tanh %97 : vector<2x32xf32>
    %99 = arith.mulf %94, %98 : vector<2x32xf32>
    %c0_35 = arith.constant 0 : index
    %100 = arith.index_cast %c3_i32 : i32 to index
    %c0_36 = arith.constant 0 : index
    %c0_37 = arith.constant 0 : index
    %101 = vector.load %arg4[%c0_35, %100, %c0_36, %c0_37] : memref<1x8x2x32xf32, #tpu.memory_space<vmem>>, vector<1x1x2x32xf32>
    %102 = vector.shape_cast %101 : vector<1x1x2x32xf32> to vector<2x32xf32>
    %103 = vector.shape_cast %99 : vector<2x32xf32> to vector<1x1x2x32xf32>
    tpu.vector_store %arg4[%c0_35, %100, %c0_36, %c0_37], %103 {strides = array<i32>} : memref<1x8x2x32xf32, #tpu.memory_space<vmem>>, vector<1x1x2x32xf32>,
    %c4_i32 = arith.constant 4 : i32
    %c0_38 = arith.constant 0 : index
    %104 = arith.index_cast %c4_i32 : i32 to index
    %c0_39 = arith.constant 0 : index
    %c0_40 = arith.constant 0 : index
    %105 = vector.load %arg2[%c0_38, %104, %c0_39, %c0_40] : memref<1x8x2x128xf32, #tpu.memory_space<vmem>>, vector<1x1x2x128xf32>
    %106 = vector.shape_cast %105 : vector<1x1x2x128xf32> to vector<2x128xf32>
    %cst_41 = arith.constant dense<0.000000e+00> : vector<2x128xf32>
    %107 = tpu.matmul %99, %5, %cst_41 {dimension_numbers = #tpu.dot_dimension_numbers<[1], [0], [0], [1], [0, 0, 1, 1], [], []>} : vector<2x32xf32>, vector<32x128xf32>, vector<2x128xf32> -> vector<2x128xf32>
    %108 = arith.addf %106, %107 : vector<2x128xf32>
    %109 = arith.negf %108 : vector<2x128xf32>
    %110 = math.exp %109 : vector<2x128xf32>
    %cst_42 = arith.constant 1.000000e+00 : f32
    %111 = vector.broadcast %cst_42 : f32 to vector<2x128xf32>
    %112 = arith.addf %111, %110 : vector<2x128xf32>
    %113 = arith.divf %111, %112 : vector<2x128xf32>
    %114 = math.tanh %108 : vector<2x128xf32>
    %115 = vector.extract_strided_slice %113 {offsets = [0, 0], sizes = [2, 32], strides = [1, 1]} : vector<2x128xf32> to vector<2x32xf32>
    %116 = vector.extract_strided_slice %113 {offsets = [0, 32], sizes = [2, 32], strides = [1, 1]} : vector<2x128xf32> to vector<2x32xf32>
    %117 = vector.extract_strided_slice %114 {offsets = [0, 64], sizes = [2, 32], strides = [1, 1]} : vector<2x128xf32> to vector<2x32xf32>
    %118 = vector.extract_strided_slice %113 {offsets = [0, 96], sizes = [2, 32], strides = [1, 1]} : vector<2x128xf32> to vector<2x32xf32>
    %119 = arith.mulf %116, %97 : vector<2x32xf32>
    %120 = arith.mulf %115, %117 : vector<2x32xf32>
    %121 = arith.addf %119, %120 : vector<2x32xf32>
    %122 = math.tanh %121 : vector<2x32xf32>
    %123 = arith.mulf %118, %122 : vector<2x32xf32>
    %c0_43 = arith.constant 0 : index
    %124 = arith.index_cast %c4_i32 : i32 to index
    %c0_44 = arith.constant 0 : index
    %c0_45 = arith.constant 0 : index
    %125 = vector.load %arg4[%c0_43, %124, %c0_44, %c0_45] : memref<1x8x2x32xf32, #tpu.memory_space<vmem>>, vector<1x1x2x32xf32>
    %126 = vector.shape_cast %125 : vector<1x1x2x32xf32> to vector<2x32xf32>
    %127 = vector.shape_cast %123 : vector<2x32xf32> to vector<1x1x2x32xf32>
    tpu.vector_store %arg4[%c0_43, %124, %c0_44, %c0_45], %127 {strides = array<i32>} : memref<1x8x2x32xf32, #tpu.memory_space<vmem>>, vector<1x1x2x32xf32>,
    %c5_i32 = arith.constant 5 : i32
    %c0_46 = arith.constant 0 : index
    %128 = arith.index_cast %c5_i32 : i32 to index
    %c0_47 = arith.constant 0 : index
    %c0_48 = arith.constant 0 : index
    %129 = vector.load %arg2[%c0_46, %128, %c0_47, %c0_48] : memref<1x8x2x128xf32, #tpu.memory_space<vmem>>, vector<1x1x2x128xf32>
    %130 = vector.shape_cast %129 : vector<1x1x2x128xf32> to vector<2x128xf32>
    %cst_49 = arith.constant dense<0.000000e+00> : vector<2x128xf32>
    %131 = tpu.matmul %123, %5, %cst_49 {dimension_numbers = #tpu.dot_dimension_numbers<[1], [0], [0], [1], [0, 0, 1, 1], [], []>} : vector<2x32xf32>, vector<32x128xf32>, vector<2x128xf32> -> vector<2x128xf32>
    %132 = arith.addf %130, %131 : vector<2x128xf32>
    %133 = arith.negf %132 : vector<2x128xf32>
    %134 = math.exp %133 : vector<2x128xf32>
    %cst_50 = arith.constant 1.000000e+00 : f32
    %135 = vector.broadcast %cst_50 : f32 to vector<2x128xf32>
    %136 = arith.addf %135, %134 : vector<2x128xf32>
    %137 = arith.divf %135, %136 : vector<2x128xf32>
    %138 = math.tanh %132 : vector<2x128xf32>
    %139 = vector.extract_strided_slice %137 {offsets = [0, 0], sizes = [2, 32], strides = [1, 1]} : vector<2x128xf32> to vector<2x32xf32>
    %140 = vector.extract_strided_slice %137 {offsets = [0, 32], sizes = [2, 32], strides = [1, 1]} : vector<2x128xf32> to vector<2x32xf32>
    %141 = vector.extract_strided_slice %138 {offsets = [0, 64], sizes = [2, 32], strides = [1, 1]} : vector<2x128xf32> to vector<2x32xf32>
    %142 = vector.extract_strided_slice %137 {offsets = [0, 96], sizes = [2, 32], strides = [1, 1]} : vector<2x128xf32> to vector<2x32xf32>
    %143 = arith.mulf %140, %121 : vector<2x32xf32>
    %144 = arith.mulf %139, %141 : vector<2x32xf32>
    %145 = arith.addf %143, %144 : vector<2x32xf32>
    %146 = math.tanh %145 : vector<2x32xf32>
    %147 = arith.mulf %142, %146 : vector<2x32xf32>
    %c0_51 = arith.constant 0 : index
    %148 = arith.index_cast %c5_i32 : i32 to index
    %c0_52 = arith.constant 0 : index
    %c0_53 = arith.constant 0 : index
    %149 = vector.load %arg4[%c0_51, %148, %c0_52, %c0_53] : memref<1x8x2x32xf32, #tpu.memory_space<vmem>>, vector<1x1x2x32xf32>
    %150 = vector.shape_cast %149 : vector<1x1x2x32xf32> to vector<2x32xf32>
    %151 = vector.shape_cast %147 : vector<2x32xf32> to vector<1x1x2x32xf32>
    tpu.vector_store %arg4[%c0_51, %148, %c0_52, %c0_53], %151 {strides = array<i32>} : memref<1x8x2x32xf32, #tpu.memory_space<vmem>>, vector<1x1x2x32xf32>,
    %c6_i32 = arith.constant 6 : i32
    %c0_54 = arith.constant 0 : index
    %152 = arith.index_cast %c6_i32 : i32 to index
    %c0_55 = arith.constant 0 : index
    %c0_56 = arith.constant 0 : index
    %153 = vector.load %arg2[%c0_54, %152, %c0_55, %c0_56] : memref<1x8x2x128xf32, #tpu.memory_space<vmem>>, vector<1x1x2x128xf32>
    %154 = vector.shape_cast %153 : vector<1x1x2x128xf32> to vector<2x128xf32>
    %cst_57 = arith.constant dense<0.000000e+00> : vector<2x128xf32>
    %155 = tpu.matmul %147, %5, %cst_57 {dimension_numbers = #tpu.dot_dimension_numbers<[1], [0], [0], [1], [0, 0, 1, 1], [], []>} : vector<2x32xf32>, vector<32x128xf32>, vector<2x128xf32> -> vector<2x128xf32>
    %156 = arith.addf %154, %155 : vector<2x128xf32>
    %157 = arith.negf %156 : vector<2x128xf32>
    %158 = math.exp %157 : vector<2x128xf32>
    %cst_58 = arith.constant 1.000000e+00 : f32
    %159 = vector.broadcast %cst_58 : f32 to vector<2x128xf32>
    %160 = arith.addf %159, %158 : vector<2x128xf32>
    %161 = arith.divf %159, %160 : vector<2x128xf32>
    %162 = math.tanh %156 : vector<2x128xf32>
    %163 = vector.extract_strided_slice %161 {offsets = [0, 0], sizes = [2, 32], strides = [1, 1]} : vector<2x128xf32> to vector<2x32xf32>
    %164 = vector.extract_strided_slice %161 {offsets = [0, 32], sizes = [2, 32], strides = [1, 1]} : vector<2x128xf32> to vector<2x32xf32>
    %165 = vector.extract_strided_slice %162 {offsets = [0, 64], sizes = [2, 32], strides = [1, 1]} : vector<2x128xf32> to vector<2x32xf32>
    %166 = vector.extract_strided_slice %161 {offsets = [0, 96], sizes = [2, 32], strides = [1, 1]} : vector<2x128xf32> to vector<2x32xf32>
    %167 = arith.mulf %164, %145 : vector<2x32xf32>
    %168 = arith.mulf %163, %165 : vector<2x32xf32>
    %169 = arith.addf %167, %168 : vector<2x32xf32>
    %170 = math.tanh %169 : vector<2x32xf32>
    %171 = arith.mulf %166, %170 : vector<2x32xf32>
    %c0_59 = arith.constant 0 : index
    %172 = arith.index_cast %c6_i32 : i32 to index
    %c0_60 = arith.constant 0 : index
    %c0_61 = arith.constant 0 : index
    %173 = vector.load %arg4[%c0_59, %172, %c0_60, %c0_61] : memref<1x8x2x32xf32, #tpu.memory_space<vmem>>, vector<1x1x2x32xf32>
    %174 = vector.shape_cast %173 : vector<1x1x2x32xf32> to vector<2x32xf32>
    %175 = vector.shape_cast %171 : vector<2x32xf32> to vector<1x1x2x32xf32>
    tpu.vector_store %arg4[%c0_59, %172, %c0_60, %c0_61], %175 {strides = array<i32>} : memref<1x8x2x32xf32, #tpu.memory_space<vmem>>, vector<1x1x2x32xf32>,
    %c7_i32 = arith.constant 7 : i32
    %c0_62 = arith.constant 0 : index
    %176 = arith.index_cast %c7_i32 : i32 to index
    %c0_63 = arith.constant 0 : index
    %c0_64 = arith.constant 0 : index
    %177 = vector.load %arg2[%c0_62, %176, %c0_63, %c0_64] : memref<1x8x2x128xf32, #tpu.memory_space<vmem>>, vector<1x1x2x128xf32>
    %178 = vector.shape_cast %177 : vector<1x1x2x128xf32> to vector<2x128xf32>
    %cst_65 = arith.constant dense<0.000000e+00> : vector<2x128xf32>
    %179 = tpu.matmul %171, %5, %cst_65 {dimension_numbers = #tpu.dot_dimension_numbers<[1], [0], [0], [1], [0, 0, 1, 1], [], []>} : vector<2x32xf32>, vector<32x128xf32>, vector<2x128xf32> -> vector<2x128xf32>
    %180 = arith.addf %178, %179 : vector<2x128xf32>
    %181 = arith.negf %180 : vector<2x128xf32>
    %182 = math.exp %181 : vector<2x128xf32>
    %cst_66 = arith.constant 1.000000e+00 : f32
    %183 = vector.broadcast %cst_66 : f32 to vector<2x128xf32>
    %184 = arith.addf %183, %182 : vector<2x128xf32>
    %185 = arith.divf %183, %184 : vector<2x128xf32>
    %186 = math.tanh %180 : vector<2x128xf32>
    %187 = vector.extract_strided_slice %185 {offsets = [0, 0], sizes = [2, 32], strides = [1, 1]} : vector<2x128xf32> to vector<2x32xf32>
    %188 = vector.extract_strided_slice %185 {offsets = [0, 32], sizes = [2, 32], strides = [1, 1]} : vector<2x128xf32> to vector<2x32xf32>
    %189 = vector.extract_strided_slice %186 {offsets = [0, 64], sizes = [2, 32], strides = [1, 1]} : vector<2x128xf32> to vector<2x32xf32>
    %190 = vector.extract_strided_slice %185 {offsets = [0, 96], sizes = [2, 32], strides = [1, 1]} : vector<2x128xf32> to vector<2x32xf32>
    %191 = arith.mulf %188, %169 : vector<2x32xf32>
    %192 = arith.mulf %187, %189 : vector<2x32xf32>
    %193 = arith.addf %191, %192 : vector<2x32xf32>
    %194 = math.tanh %193 : vector<2x32xf32>
    %195 = arith.mulf %190, %194 : vector<2x32xf32>
    %c0_67 = arith.constant 0 : index
    %196 = arith.index_cast %c7_i32 : i32 to index
    %c0_68 = arith.constant 0 : index
    %c0_69 = arith.constant 0 : index
    %197 = vector.load %arg4[%c0_67, %196, %c0_68, %c0_69] : memref<1x8x2x32xf32, #tpu.memory_space<vmem>>, vector<1x1x2x32xf32>
    %198 = vector.shape_cast %197 : vector<1x1x2x32xf32> to vector<2x32xf32>
    %199 = vector.shape_cast %195 : vector<2x32xf32> to vector<1x1x2x32xf32>
    tpu.vector_store %arg4[%c0_67, %196, %c0_68, %c0_69], %199 {strides = array<i32>} : memref<1x8x2x32xf32, #tpu.memory_space<vmem>>, vector<1x1x2x32xf32>,
    %c8_i32 = arith.constant 8 : i32
    %c0_70 = arith.constant 0 : index
    %c0_71 = arith.constant 0 : index
    %200 = vector.load %arg5[%c0_70, %c0_71] : memref<2x32xf32, #tpu.memory_space<vmem>>, vector<2x32xf32>
    tpu.vector_store %arg5[%c0_70, %c0_71], %195 {strides = array<i32>} : memref<2x32xf32, #tpu.memory_space<vmem>>, vector<2x32xf32>,
    %c0_72 = arith.constant 0 : index
    %c0_73 = arith.constant 0 : index
    %201 = vector.load %arg6[%c0_72, %c0_73] : memref<2x32xf32, #tpu.memory_space<vmem>>, vector<2x32xf32>
    tpu.vector_store %arg6[%c0_72, %c0_73], %193 {strides = array<i32>} : memref<2x32xf32, #tpu.memory_space<vmem>>, vector<2x32xf32>,
    return
  }
  func.func @transform_0(%arg0: i32, %arg1: i32) -> (i32, i32, i32, i32) {
    %c0_i32 = arith.constant 0 : i32
    %c0_i32_0 = arith.constant 0 : i32
    %c0_i32_1 = arith.constant 0 : i32
    return %arg0, %arg1, %c0_i32, %c0_i32_0 : i32, i32, i32, i32
  }
  func.func @transform_1(%arg0: i32, %arg1: i32) -> (i32, i32, i32) {
    %c0_i32 = arith.constant 0 : i32
    %c0_i32_0 = arith.constant 0 : i32
    %c0_i32_1 = arith.constant 0 : i32
    %c0_i32_2 = arith.constant 0 : i32
    return %c0_i32, %c0_i32_0, %c0_i32_1 : i32, i32, i32
  }
  func.func @transform_2(%arg0: i32, %arg1: i32) -> (i32, i32, i32, i32) {
    %c0_i32 = arith.constant 0 : i32
    %c0_i32_0 = arith.constant 0 : i32
    %c0_i32_1 = arith.constant 0 : i32
    return %arg0, %arg1, %c0_i32, %c0_i32_0 : i32, i32, i32, i32
  }
}

</mosaic_0001>

<llo_original>
// kernel: tpu_custom_call.1
$region0: #{tpu_custom_call.1}
  #allocation0 [shape = 'u32[]', space=smem, size = 0x4, offset = 0x4, fixed_abs, tag = 'smem constant byte address 0x4 - core index']
  #allocation1 [shape = 'u32[72,128]{1,0:T(1,128)}', space=vmem, size = 0x9000, scoped, tag = 'internal scratch']
  #allocation2 [shape = 'f32[2,32]{1,0:T(2,128)}', space=vmem, size = 0x400, scoped, tag = 'scratch operand']
  #allocation3 [shape = 'f32[2,32]{1,0:T(2,128)}', space=vmem, size = 0x400, scoped, tag = 'scratch operand']
  %s0 = inlined_call_operand.hbm [shape: f32[2,16,2,128], index: 0, kind: input, shape index: {}]
  %s1 = inlined_call_operand.hbm [shape: f32[2,32,128], index: 1, kind: input, shape index: {}]
  %s2 = inlined_call_operand.hbm [shape: f32[2,16,2,32], index: 2, kind: output, shape index: {}]
  %s3 = sld [smem:[#allocation0]]
  $region53: #{tpu_custom_call.1} parent=0
    _
  %s5 = ssub.s32 1, %s3
  %s6 = scalar_select 0, %s5, %s3
  $region1: #{tpu_custom_call.1} parent=0
    #allocation4 [shape = 'u8[16384]{0}', space=vmem, size = 0x4000, scoped, tag = 'input window, operand 0']
    #allocation5 [shape = 's32[2]{0}', space=sflag, size = 0x8, scoped, tag = 'scoped memory for tpu_custom_call.1']
    #allocation6 [shape = 's32[2]{0}', space=sflag, size = 0x8, scoped, tag = 'scoped memory for tpu_custom_call.1']
    #allocation7 [shape = 'u8[32768]{0}', space=vmem, size = 0x8000, scoped, tag = 'input window, operand 1, single buffered']
    #allocation8 [shape = 's32[1]{0}', space=sflag, size = 0x4, scoped, tag = 'scoped memory for tpu_custom_call.1']
    #allocation9 [shape = 'u8[16384]{0}', space=vmem, size = 0x4000, scoped, tag = 'output window, operand 0']
    %7 = vsyncpa [#allocation5], 0
    %s8 = scalar_lea.sflag [#allocation5], 1
    %9 = vsyncpa %s8, 0
    %10 = vsyncpa [#allocation8], 0
    %11 = vsyncpa [#allocation6], 0
    %s12 = scalar_lea.sflag [#allocation6], 1
    %13 = vsyncpa %s12, 0
    loop: start=0, step=1, limit=6
    $region2: #{tpu_custom_call.1} parent=1 // loop_pre_header
      _
    $region3: #{tpu_custom_call.1} parent=1 // loop_header
      %s15 = sphi 0, %s19
      %p16 = scmp.ge.s32.totalorder %s15, 6
      %s22 = sphi 0, %s34
      %s23 = sphi 0, %s30
      %s24 = sphi 0, %s22
      %s25 = sphi 0, %s23
      %s26 = sphi 0, %s24
      %s27 = sphi 0, %s25
      %s39 = sphi 0, %s41
      %s42 = sphi 0, %s39
      %s43 = sphi 0, %s42
      %s59 = sphi 0, %s43
      %s63 = sphi 0, %s63
      %s65 = sphi 0, %s63
      %s66 = sphi 0, %s65
      %s80 = sphi 0, %s66
      %s88 = sphi 0, %s90
      %s91 = sphi 0, %s88
      %s92 = sphi 0, %s91
      %s108 = sphi 0, %s92
    $region4: #{tpu_custom_call.1} parent=1 // loop_header_branch
      %18 = sbr.rel (%p16) target = $region8
    $region5: #{tpu_custom_call.1} parent=1 // loop_body
      %s20 = ssub.s32 %s15, 1
      %s21 = ssub.s32 %s15, 2
      %s28 = sadd.s32 1, %s23
      %p29 = scmp.ge.s32.totalorder %s28, 2
      %s30 = scalar_select %p29, 0, %s28
      %s31 = sadd.s32 1, %s22
      %s32 = scalar_select %p29, %s31, %s22
      %p33 = scmp.ge.s32.totalorder %s32, 2
      %s34 = scalar_select %p33, 0, %s32
      %s35 = ssub.s32 %s22, %s34
      %s36 = ssub.s32 %s23, %s30
      %s37 = sor.u32 %s35, %s36
      %p38 = scmp.eq.s32.totalorder %s37, 0
      %s40 = sadd.s32 %s39, 1
      %s41 = scalar_select %p38, %s39, %s40
      %p44 = pneg %p38
      %p45 = scmp.eq.s32.totalorder %s15, 3
      %p46 = por %p44, %p45
      %p47 = scmp.ne.s32.totalorder %s39, %s42
      %p48 = scmp.eq.s32.totalorder %s15, 0
      %p49 = por %p47, %p48
      %p50 = scmp.ne.s32.totalorder %s39, %s42
      %p51 = scmp.eq.s32.totalorder %s20, 3
      %p52 = por %p50, %p51
      %p53 = scmp.ne.s32.totalorder %s42, %s43
      %p54 = scmp.eq.s32.totalorder %s20, 0
      %p55 = por %p53, %p54
      %p56 = scmp.ne.s32.totalorder %s42, %s43
      %p57 = scmp.eq.s32.totalorder %s21, 3
      %p58 = por %p56, %p57
      %p60 = scmp.ne.s32.totalorder %s43, %s59
      %p61 = scmp.eq.s32.totalorder %s21, 0
      %p62 = por %p60, %p61
      %s64 = sadd.s32 %s63, 1
      %p67 = scmp.eq.s32.totalorder %s15, 3
      %p68 = scmp.ne.s32.totalorder %s63, %s65
      %p69 = scmp.eq.s32.totalorder %s15, 0
      %p70 = por %p68, %p69
      %p71 = scmp.ne.s32.totalorder %s63, %s65
      %p72 = scmp.eq.s32.totalorder %s20, 3
      %p73 = por %p71, %p72
      %p74 = scmp.ne.s32.totalorder %s65, %s66
      %p75 = scmp.eq.s32.totalorder %s20, 0
      %p76 = por %p74, %p75
      %p77 = scmp.ne.s32.totalorder %s65, %s66
      %p78 = scmp.eq.s32.totalorder %s21, 3
      %p79 = por %p77, %p78
      %p81 = scmp.ne.s32.totalorder %s66, %s80
      %p82 = scmp.eq.s32.totalorder %s21, 0
      %p83 = por %p81, %p82
      %s84 = ssub.s32 %s22, %s34
      %s85 = ssub.s32 %s23, %s30
      %s86 = sor.u32 %s84, %s85
      %p87 = scmp.eq.s32.totalorder %s86, 0
      %s89 = sadd.s32 %s88, 1
      %s90 = scalar_select %p87, %s88, %s89
      %p93 = pneg %p87
      %p94 = scmp.eq.s32.totalorder %s15, 3
      %p95 = por %p93, %p94
      %p96 = scmp.ne.s32.totalorder %s88, %s91
      %p97 = scmp.eq.s32.totalorder %s15, 0
      %p98 = por %p96, %p97
      %p99 = scmp.ne.s32.totalorder %s88, %s91
      %p100 = scmp.eq.s32.totalorder %s20, 3
      %p101 = por %p99, %p100
      %p102 = scmp.ne.s32.totalorder %s91, %s92
      %p103 = scmp.eq.s32.totalorder %s20, 0
      %p104 = por %p102, %p103
      %p105 = scmp.ne.s32.totalorder %s91, %s92
      %p106 = scmp.eq.s32.totalorder %s21, 3
      %p107 = por %p105, %p106
      %p109 = scmp.ne.s32.totalorder %s92, %s108
      %p110 = scmp.eq.s32.totalorder %s21, 0
      %p111 = por %p109, %p110
      %p112 = scmp.le.s32.totalorder 1, %s15
      %p113 = scmp.lt.s32.totalorder %s15, 5
      %p114 = pnand %p112, %p113
      %p115 = pneg %p114
      // Predicated region
      $region9: #{tpu_custom_call.1} parent=5 // pred_check
        _
      $region10: #{tpu_custom_call.1} parent=5 // pred_check_branch
        %117 = sbr.rel (%p114) target = $region12
      $region11: #{tpu_custom_call.1} parent=5 // pred_region
        %s118 = ssub.s32 %s15, 1
        // Predicated region
        $region13: #{tpu_custom_call.1} parent=11 // pred_check
          %p119 = pneg %p76
        $region14: #{tpu_custom_call.1} parent=11 // pred_check_branch
          %121 = sbr.rel (%p119) target = $region16
        $region15: #{tpu_custom_call.1} parent=11 // pred_region
          %123 = vsyncadd [#allocation8], 0
          %s124 = sshll.u32 %s1, 4
          %s125 = int_to_ptr.hbm [resolvable:$true] %s124
          %s126 = sshll.u32 [#allocation7], 4
          %s127 = int_to_ptr.vmem [resolvable:$true] %s126
          %132 = dma.hbm_to_vmem [thread:$0]  %s125, 1024, %s127, [#allocation8], 128, 128, 8
        $region16: #{tpu_custom_call.1} parent=11 // pred_fallthru
          _
      $region12: #{tpu_custom_call.1} parent=5 // pred_fallthru
        _
      %p133 = scmp.lt.s32.totalorder %s15, 4
      // Predicated region
      $region17: #{tpu_custom_call.1} parent=5 // pred_check
        %p134 = pneg %p133
      $region18: #{tpu_custom_call.1} parent=5 // pred_check_branch
        %136 = sbr.rel (%p134) target = $region20
      $region19: #{tpu_custom_call.1} parent=5 // pred_region
        // Predicated region
        $region21: #{tpu_custom_call.1} parent=19 // pred_check
          %p137 = pneg %p49
        $region22: #{tpu_custom_call.1} parent=19 // pred_check_branch
          %139 = sbr.rel (%p137) target = $region24
        $region23: #{tpu_custom_call.1} parent=19 // pred_region
          %s140 = sand.u32 %s39, 1
          %s141 = scalar_lea.sflag [#allocation5], %s140
          %s142 = sand.u32 %s39, 1
          %s143 = smul.addr %s142, 16
          %s144 = scalar_lea.vmem [#allocation4], %s143
          %s145 = smul.u32 8, %s23
          %147 = vsyncadd %s141, 0
          %s148 = smul.addr %s22, 16
          %s149 = sadd.s32 %s145, %s148
          %s150 = smul.addr %s149, 2
          %s151 = scalar_lea.hbm %s0, %s150
          %s152 = sshll.u32 %s151, 4
          %s153 = int_to_ptr.hbm [resolvable:$true] %s152
          %s154 = sshll.u32 %s144, 4
          %s155 = int_to_ptr.vmem [resolvable:$true] %s154
          %160 = dma.hbm_to_vmem [thread:$0]  %s153, 256, %s155, %s141, 32, 32, 2
        $region24: #{tpu_custom_call.1} parent=19 // pred_fallthru
          _
      $region20: #{tpu_custom_call.1} parent=5 // pred_fallthru
        _
      %p161 = scmp.le.s32.totalorder 1, %s15
      %p162 = scmp.lt.s32.totalorder %s15, 5
      %p163 = pnand %p161, %p162
      %p164 = pneg %p163
      // Predicated region
      $region25: #{tpu_custom_call.1} parent=5 // pred_check
        _
      $region26: #{tpu_custom_call.1} parent=5 // pred_check_branch
        %166 = sbr.rel (%p163) target = $region28
      $region27: #{tpu_custom_call.1} parent=5 // pred_region
        %s167 = ssub.s32 %s15, 1
        %s168 = sand.u32 %s42, 1
        %s169 = scalar_lea.sflag [#allocation5], %s168
        %s170 = sand.u32 %s42, 1
        %s171 = smul.addr %s170, 16
        %s172 = scalar_lea.vmem [#allocation4], %s171
        // Predicated region
        $region29: #{tpu_custom_call.1} parent=27 // pred_check
          %p173 = pneg %p55
        $region30: #{tpu_custom_call.1} parent=27 // pred_check_branch
          %175 = sbr.rel (%p173) target = $region32
        $region31: #{tpu_custom_call.1} parent=27 // pred_region
          %177 = dma.done %s169, 256
        $region32: #{tpu_custom_call.1} parent=27 // pred_fallthru
          _
        // Predicated region
        $region33: #{tpu_custom_call.1} parent=27 // pred_check
          %p178 = pneg %p76
        $region34: #{tpu_custom_call.1} parent=27 // pred_check_branch
          %180 = sbr.rel (%p178) target = $region36
        $region35: #{tpu_custom_call.1} parent=27 // pred_region
          %182 = dma.done [#allocation8], 1024
        $region36: #{tpu_custom_call.1} parent=27 // pred_fallthru
          _
        %s183 = sand.u32 %s42, 1
        %s184 = scalar_lea.sflag [#allocation5], %s183
        %s185 = sand.u32 %s42, 1
        %s186 = smul.addr %s185, 16
        %s187 = scalar_lea.vmem [#allocation4], %s186
        %p188 = pneg %p55
        %p189 = pneg %p52
        %p190 = pneg %p76
        %p191 = pneg %p73
        %p192 = pneg %p104
        %p193 = pneg %p101
        %s194 = sand.u32 %s91, 1
        %s195 = scalar_lea.sflag [#allocation6], %s194
        %s196 = sand.u32 %s91, 1
        %s197 = smul.addr %s196, 16
        %s198 = scalar_lea.vmem [#allocation9], %s197
        %s199 = smul.u32 8, %s25
        %s200 = smul.u32 8, %s25
        %p201 = scmp.eq.s32.totalorder %s25, 0
        // Predicated region
        $region37: #{tpu_custom_call.1} parent=27 // pred_check
          %p202 = pneg %p201
        $region38: #{tpu_custom_call.1} parent=27 // pred_check_branch
          %204 = sbr.rel (%p202) target = $region40
        $region39: #{tpu_custom_call.1} parent=27 // pred_region
          %vm205 = vcmask 254976
          %206 = vst.msk [vmem:[#allocation2] sm:$0x3] %vm205, 0.0
          %207 = vst.msk [vmem:[#allocation3] sm:$0x3] %vm205, 0.0
        $region40: #{tpu_custom_call.1} parent=27 // pred_fallthru
          _
        %s208 = smul.u32 %s24, 32
        %s209 = scalar_lea.vmem [#allocation7], %s208
        %v210 = vld [vmem:[%s209] sm:$0xff]
        %v211 = vld [vmem:[%s209 + $0x8] sm:$0xff]
        %v212 = vld [vmem:[%s209 + $0x10] sm:$0xff]
        %v213 = vld [vmem:[%s209 + $0x18] sm:$0xff]
        %v214 = vld [vmem:[#allocation2] sm:$0x3]
        %v215 = vld [vmem:[#allocation3] sm:$0x3]
        %v216 = vld [vmem:[%s172] sm:$0x3]
        %vm217 = vcmask 261120
        %v219 = vsel %vm217, %v214, 0
        %221 = vmatpush.msra.mxu0 0.0
        %222 = vmatpush.msra.mxu0 0.0
        %223 = vmatpush.msra.mxu0 0.0
        %224 = vmatpush.msra.mxu0 0.0
        %225 = vmatpush.msra.mxu0 0.0
        %226 = vmatpush.msra.mxu0 0.0
        %227 = vmatpush.msra.mxu0 0.0
        %228 = vmatpush.msra.mxu0 0.0
        %229 = vmatpush.msra.mxu0 0.0
        %230 = vmatpush.msra.mxu0 0.0
        %231 = vmatpush.msra.mxu0 0.0
        %232 = vmatpush.msra.mxu0 0.0
        %233 = vmatpush.msra.mxu0 %v213
        %234 = vmatpush.msra.mxu0 %v212
        %235 = vmatpush.msra.mxu0 %v211
        %236 = vmatpush.msra.mxu0 %v210
        %237 = vmatmul.f32.gmra.mxu0 %v219
        %v238 = vpop.f32.mrf.mxu0
        %v239 = vadd.f32 0.0, %v238
        %240 = vdwg.mxu0
        %v241 = vadd.f32 %v216, %v239
        %v242 = vxor.u32 %v241, 2147483648
        %v243 = vmul.f32 %v242, 1.442695
        %v244 = vpow.pop %v243
        %v245 = vadd.f32 %v244, 1.0
        %v246 = vrcp.pop %v245
        %v247 = vmul.f32 %v245, %v246
        %v248 = vsub.f32 1.0, %v247
        %v249 = vmul.f32 %v246, %v248
        %v250 = vadd.f32 %v246, %v249
        %vm251 = vweird.f32 %v245
        %vm252 = vweird.f32 %v246
        %vm253 = vmor %vm251, %vm252
        %v254 = vsel %vm253, %v246, %v250
        %v255 = vand.u32 2147483647, %v245
        %vm256 = vcmp.eq.f32.partialorder %v255, 8.507059e+37
        %v257 = vand.u32 %v245, 2147483648
        %v258 = vor.u32 1.1754944e-38, %v257
        %v259 = vsel %vm256, %v258, %v254
        %v260 = vmul.f32 1.0, %v259
        %v261 = vtanh.pop %v241
        %263 = vrot.lane.b32.xlu0 %v215, 32
        %v264 = vpop.permute.xlu0 %263
        %v266 = vmul.f32 %v260, %v264
        %268 = vrot.lane.b32.xlu0 %v261, 64
        %v269 = vpop.permute.xlu0 %268
        %v271 = vmul.f32 %v260, %v269
        %273 = vrot.lane.b32.xlu0 %v271, 32
        %v274 = vpop.permute.xlu0 %273
        %v276 = vadd.f32 %v266, %v274
        %v277 = vtanh.pop %v276
        %279 = vrot.lane.b32.xlu0 %v277, 64
        %v280 = vpop.permute.xlu0 %279
        %v282 = vmul.f32 %v260, %v280
        %284 = vrot.lane.b32.xlu0 %v282, 32
        %v285 = vpop.permute.xlu0 %284
        %vm287 = vcmask 254976
        %288 = vst.msk [vmem:[%s198] sm:$0x3] %vm287, %v285
        %s289 = scalar_lea.vmem %s172, 2 [#allocation4]
        %v290 = vld [vmem:[%s289] sm:$0x3]
        %v291 = vsel %vm217, %v285, 0
        %293 = vmatpush.msra.mxu0 0.0
        %294 = vmatpush.msra.mxu0 0.0
        %295 = vmatpush.msra.mxu0 0.0
        %296 = vmatpush.msra.mxu0 0.0
        %297 = vmatpush.msra.mxu0 0.0
        %298 = vmatpush.msra.mxu0 0.0
        %299 = vmatpush.msra.mxu0 0.0
        %300 = vmatpush.msra.mxu0 0.0
        %301 = vmatpush.msra.mxu0 0.0
        %302 = vmatpush.msra.mxu0 0.0
        %303 = vmatpush.msra.mxu0 0.0
        %304 = vmatpush.msra.mxu0 0.0
        %305 = vmatpush.msra.mxu0 %v213
        %306 = vmatpush.msra.mxu0 %v212
        %307 = vmatpush.msra.mxu0 %v211
        %308 = vmatpush.msra.mxu0 %v210
        %309 = vmatmul.f32.gmra.mxu0 %v291
        %v310 = vpop.f32.mrf.mxu0
        %v311 = vadd.f32 0.0, %v310
        %312 = vdwg.mxu0
        %v313 = vadd.f32 %v290, %v311
        %v314 = vxor.u32 %v313, 2147483648
        %v315 = vmul.f32 %v314, 1.442695
        %v316 = vpow.pop %v315
        %v317 = vadd.f32 %v316, 1.0
        %v318 = vrcp.pop %v317
        %v319 = vmul.f32 %v317, %v318
        %v320 = vsub.f32 1.0, %v319
        %v321 = vmul.f32 %v318, %v320
        %v322 = vadd.f32 %v318, %v321
        %vm323 = vweird.f32 %v317
        %vm324 = vweird.f32 %v318
        %vm325 = vmor %vm323, %vm324
        %v326 = vsel %vm325, %v318, %v322
        %v327 = vand.u32 2147483647, %v317
        %vm328 = vcmp.eq.f32.partialorder %v327, 8.507059e+37
        %v329 = vand.u32 %v317, 2147483648
        %v330 = vor.u32 1.1754944e-38, %v329
        %v331 = vsel %vm328, %v330, %v326
        %v332 = vmul.f32 1.0, %v331
        %v333 = vtanh.pop %v313
        %v334 = vmul.f32 %v332, %v276
        %336 = vrot.lane.b32.xlu0 %v333, 64
        %v337 = vpop.permute.xlu0 %336
        %v339 = vmul.f32 %v332, %v337
        %341 = vrot.lane.b32.xlu0 %v339, 32
        %v342 = vpop.permute.xlu0 %341
        %v344 = vadd.f32 %v334, %v342
        %v345 = vtanh.pop %v344
        %347 = vrot.lane.b32.xlu0 %v345, 64
        %v348 = vpop.permute.xlu0 %347
        %v350 = vmul.f32 %v332, %v348
        %352 = vrot.lane.b32.xlu0 %v350, 32
        %v353 = vpop.permute.xlu0 %352
        %s355 = scalar_lea.vmem %s198, 2 [#allocation9]
        %356 = vst.msk [vmem:[%s355] sm:$0x3] %vm287, %v353
        %s357 = scalar_lea.vmem %s172, 4 [#allocation4]
        %v358 = vld [vmem:[%s357] sm:$0x3]
        %v359 = vsel %vm217, %v353, 0
        %361 = vmatpush.msra.mxu0 0.0
        %362 = vmatpush.msra.mxu0 0.0
        %363 = vmatpush.msra.mxu0 0.0
        %364 = vmatpush.msra.mxu0 0.0
        %365 = vmatpush.msra.mxu0 0.0
        %366 = vmatpush.msra.mxu0 0.0
        %367 = vmatpush.msra.mxu0 0.0
        %368 = vmatpush.msra.mxu0 0.0
        %369 = vmatpush.msra.mxu0 0.0
        %370 = vmatpush.msra.mxu0 0.0
        %371 = vmatpush.msra.mxu0 0.0
        %372 = vmatpush.msra.mxu0 0.0
        %373 = vmatpush.msra.mxu0 %v213
        %374 = vmatpush.msra.mxu0 %v212
        %375 = vmatpush.msra.mxu0 %v211
        %376 = vmatpush.msra.mxu0 %v210
        %377 = vmatmul.f32.gmra.mxu0 %v359
        %v378 = vpop.f32.mrf.mxu0
        %v379 = vadd.f32 0.0, %v378
        %380 = vdwg.mxu0
        %v381 = vadd.f32 %v358, %v379
        %v382 = vxor.u32 %v381, 2147483648
        %v383 = vmul.f32 %v382, 1.442695
        %v384 = vpow.pop %v383
        %v385 = vadd.f32 %v384, 1.0
        %v386 = vrcp.pop %v385
        %v387 = vmul.f32 %v385, %v386
        %v388 = vsub.f32 1.0, %v387
        %v389 = vmul.f32 %v386, %v388
        %v390 = vadd.f32 %v386, %v389
        %vm391 = vweird.f32 %v385
        %vm392 = vweird.f32 %v386
        %vm393 = vmor %vm391, %vm392
        %v394 = vsel %vm393, %v386, %v390
        %v395 = vand.u32 2147483647, %v385
        %vm396 = vcmp.eq.f32.partialorder %v395, 8.507059e+37
        %v397 = vand.u32 %v385, 2147483648
        %v398 = vor.u32 1.1754944e-38, %v397
        %v399 = vsel %vm396, %v398, %v394
        %v400 = vmul.f32 1.0, %v399
        %v401 = vtanh.pop %v381
        %v402 = vmul.f32 %v400, %v344
        %404 = vrot.lane.b32.xlu0 %v401, 64
        %v405 = vpop.permute.xlu0 %404
        %v407 = vmul.f32 %v400, %v405
        %409 = vrot.lane.b32.xlu0 %v407, 32
        %v410 = vpop.permute.xlu0 %409
        %v412 = vadd.f32 %v402, %v410
        %v413 = vtanh.pop %v412
        %415 = vrot.lane.b32.xlu0 %v413, 64
        %v416 = vpop.permute.xlu0 %415
        %v418 = vmul.f32 %v400, %v416
        %420 = vrot.lane.b32.xlu0 %v418, 32
        %v421 = vpop.permute.xlu0 %420
        %s423 = scalar_lea.vmem %s198, 4 [#allocation9]
        %424 = vst.msk [vmem:[%s423] sm:$0x3] %vm287, %v421
        %s425 = scalar_lea.vmem %s172, 6 [#allocation4]
        %v426 = vld [vmem:[%s425] sm:$0x3]
        %v427 = vsel %vm217, %v421, 0
        %429 = vmatpush.msra.mxu0 0.0
        %430 = vmatpush.msra.mxu0 0.0
        %431 = vmatpush.msra.mxu0 0.0
        %432 = vmatpush.msra.mxu0 0.0
        %433 = vmatpush.msra.mxu0 0.0
        %434 = vmatpush.msra.mxu0 0.0
        %435 = vmatpush.msra.mxu0 0.0
        %436 = vmatpush.msra.mxu0 0.0
        %437 = vmatpush.msra.mxu0 0.0
        %438 = vmatpush.msra.mxu0 0.0
        %439 = vmatpush.msra.mxu0 0.0
        %440 = vmatpush.msra.mxu0 0.0
        %441 = vmatpush.msra.mxu0 %v213
        %442 = vmatpush.msra.mxu0 %v212
        %443 = vmatpush.msra.mxu0 %v211
        %444 = vmatpush.msra.mxu0 %v210
        %445 = vmatmul.f32.gmra.mxu0 %v427
        %v446 = vpop.f32.mrf.mxu0
        %v447 = vadd.f32 0.0, %v446
        %448 = vdwg.mxu0
        %v449 = vadd.f32 %v426, %v447
        %v450 = vxor.u32 %v449, 2147483648
        %v451 = vmul.f32 %v450, 1.442695
        %v452 = vpow.pop %v451
        %v453 = vadd.f32 %v452, 1.0
        %v454 = vrcp.pop %v453
        %v455 = vmul.f32 %v453, %v454
        %v456 = vsub.f32 1.0, %v455
        %v457 = vmul.f32 %v454, %v456
        %v458 = vadd.f32 %v454, %v457
        %vm459 = vweird.f32 %v453
        %vm460 = vweird.f32 %v454
        %vm461 = vmor %vm459, %vm460
        %v462 = vsel %vm461, %v454, %v458
        %v463 = vand.u32 2147483647, %v453
        %vm464 = vcmp.eq.f32.partialorder %v463, 8.507059e+37
        %v465 = vand.u32 %v453, 2147483648
        %v466 = vor.u32 1.1754944e-38, %v465
        %v467 = vsel %vm464, %v466, %v462
        %v468 = vmul.f32 1.0, %v467
        %v469 = vtanh.pop %v449
        %v470 = vmul.f32 %v468, %v412
        %472 = vrot.lane.b32.xlu0 %v469, 64
        %v473 = vpop.permute.xlu0 %472
        %v475 = vmul.f32 %v468, %v473
        %477 = vrot.lane.b32.xlu0 %v475, 32
        %v478 = vpop.permute.xlu0 %477
        %v480 = vadd.f32 %v470, %v478
        %v481 = vtanh.pop %v480
        %483 = vrot.lane.b32.xlu0 %v481, 64
        %v484 = vpop.permute.xlu0 %483
        %v486 = vmul.f32 %v468, %v484
        %488 = vrot.lane.b32.xlu0 %v486, 32
        %v489 = vpop.permute.xlu0 %488
        %s491 = scalar_lea.vmem %s198, 6 [#allocation9]
        %492 = vst.msk [vmem:[%s491] sm:$0x3] %vm287, %v489
        %s493 = scalar_lea.vmem %s172, 8 [#allocation4]
        %v494 = vld [vmem:[%s493] sm:$0x3]
        %v495 = vsel %vm217, %v489, 0
        %497 = vmatpush.msra.mxu0 0.0
        %498 = vmatpush.msra.mxu0 0.0
        %499 = vmatpush.msra.mxu0 0.0
        %500 = vmatpush.msra.mxu0 0.0
        %501 = vmatpush.msra.mxu0 0.0
        %502 = vmatpush.msra.mxu0 0.0
        %503 = vmatpush.msra.mxu0 0.0
        %504 = vmatpush.msra.mxu0 0.0
        %505 = vmatpush.msra.mxu0 0.0
        %506 = vmatpush.msra.mxu0 0.0
        %507 = vmatpush.msra.mxu0 0.0
        %508 = vmatpush.msra.mxu0 0.0
        %509 = vmatpush.msra.mxu0 %v213
        %510 = vmatpush.msra.mxu0 %v212
        %511 = vmatpush.msra.mxu0 %v211
        %512 = vmatpush.msra.mxu0 %v210
        %513 = vmatmul.f32.gmra.mxu0 %v495
        %v514 = vpop.f32.mrf.mxu0
        %v515 = vadd.f32 0.0, %v514
        %516 = vdwg.mxu0
        %v517 = vadd.f32 %v494, %v515
        %v518 = vxor.u32 %v517, 2147483648
        %v519 = vmul.f32 %v518, 1.442695
        %v520 = vpow.pop %v519
        %v521 = vadd.f32 %v520, 1.0
        %v522 = vrcp.pop %v521
        %v523 = vmul.f32 %v521, %v522
        %v524 = vsub.f32 1.0, %v523
        %v525 = vmul.f32 %v522, %v524
        %v526 = vadd.f32 %v522, %v525
        %vm527 = vweird.f32 %v521
        %vm528 = vweird.f32 %v522
        %vm529 = vmor %vm527, %vm528
        %v530 = vsel %vm529, %v522, %v526
        %v531 = vand.u32 2147483647, %v521
        %vm532 = vcmp.eq.f32.partialorder %v531, 8.507059e+37
        %v533 = vand.u32 %v521, 2147483648
        %v534 = vor.u32 1.1754944e-38, %v533
        %v535 = vsel %vm532, %v534, %v530
        %v536 = vmul.f32 1.0, %v535
        %v537 = vtanh.pop %v517
        %v538 = vmul.f32 %v536, %v480
        %540 = vrot.lane.b32.xlu0 %v537, 64
        %v541 = vpop.permute.xlu0 %540
        %v543 = vmul.f32 %v536, %v541
        %545 = vrot.lane.b32.xlu0 %v543, 32
        %v546 = vpop.permute.xlu0 %545
        %v548 = vadd.f32 %v538, %v546
        %v549 = vtanh.pop %v548
        %551 = vrot.lane.b32.xlu0 %v549, 64
        %v552 = vpop.permute.xlu0 %551
        %v554 = vmul.f32 %v536, %v552
        %556 = vrot.lane.b32.xlu0 %v554, 32
        %v557 = vpop.permute.xlu0 %556
        %s559 = scalar_lea.vmem %s198, 8 [#allocation9]
        %560 = vst.msk [vmem:[%s559] sm:$0x3] %vm287, %v557
        %s561 = scalar_lea.vmem %s172, 10 [#allocation4]
        %v562 = vld [vmem:[%s561] sm:$0x3]
        %v563 = vsel %vm217, %v557, 0
        %565 = vmatpush.msra.mxu0 0.0
        %566 = vmatpush.msra.mxu0 0.0
        %567 = vmatpush.msra.mxu0 0.0
        %568 = vmatpush.msra.mxu0 0.0
        %569 = vmatpush.msra.mxu0 0.0
        %570 = vmatpush.msra.mxu0 0.0
        %571 = vmatpush.msra.mxu0 0.0
        %572 = vmatpush.msra.mxu0 0.0
        %573 = vmatpush.msra.mxu0 0.0
        %574 = vmatpush.msra.mxu0 0.0
        %575 = vmatpush.msra.mxu0 0.0
        %576 = vmatpush.msra.mxu0 0.0
        %577 = vmatpush.msra.mxu0 %v213
        %578 = vmatpush.msra.mxu0 %v212
        %579 = vmatpush.msra.mxu0 %v211
        %580 = vmatpush.msra.mxu0 %v210
        %581 = vmatmul.f32.gmra.mxu0 %v563
        %v582 = vpop.f32.mrf.mxu0
        %v583 = vadd.f32 0.0, %v582
        %584 = vdwg.mxu0
        %v585 = vadd.f32 %v562, %v583
        %v586 = vxor.u32 %v585, 2147483648
        %v587 = vmul.f32 %v586, 1.442695
        %v588 = vpow.pop %v587
        %v589 = vadd.f32 %v588, 1.0
        %v590 = vrcp.pop %v589
        %v591 = vmul.f32 %v589, %v590
        %v592 = vsub.f32 1.0, %v591
        %v593 = vmul.f32 %v590, %v592
        %v594 = vadd.f32 %v590, %v593
        %vm595 = vweird.f32 %v589
        %vm596 = vweird.f32 %v590
        %vm597 = vmor %vm595, %vm596
        %v598 = vsel %vm597, %v590, %v594
        %v599 = vand.u32 2147483647, %v589
        %vm600 = vcmp.eq.f32.partialorder %v599, 8.507059e+37
        %v601 = vand.u32 %v589, 2147483648
        %v602 = vor.u32 1.1754944e-38, %v601
        %v603 = vsel %vm600, %v602, %v598
        %v604 = vmul.f32 1.0, %v603
        %v605 = vtanh.pop %v585
        %v606 = vmul.f32 %v604, %v548
        %608 = vrot.lane.b32.xlu0 %v605, 64
        %v609 = vpop.permute.xlu0 %608
        %v611 = vmul.f32 %v604, %v609
        %613 = vrot.lane.b32.xlu0 %v611, 32
        %v614 = vpop.permute.xlu0 %613
        %v616 = vadd.f32 %v606, %v614
        %v617 = vtanh.pop %v616
        %619 = vrot.lane.b32.xlu0 %v617, 64
        %v620 = vpop.permute.xlu0 %619
        %v622 = vmul.f32 %v604, %v620
        %624 = vrot.lane.b32.xlu0 %v622, 32
        %v625 = vpop.permute.xlu0 %624
        %s627 = scalar_lea.vmem %s198, 10 [#allocation9]
        %628 = vst.msk [vmem:[%s627] sm:$0x3] %vm287, %v625
        %s629 = scalar_lea.vmem %s172, 12 [#allocation4]
        %v630 = vld [vmem:[%s629] sm:$0x3]
        %v631 = vsel %vm217, %v625, 0
        %633 = vmatpush.msra.mxu0 0.0
        %634 = vmatpush.msra.mxu0 0.0
        %635 = vmatpush.msra.mxu0 0.0
        %636 = vmatpush.msra.mxu0 0.0
        %637 = vmatpush.msra.mxu0 0.0
        %638 = vmatpush.msra.mxu0 0.0
        %639 = vmatpush.msra.mxu0 0.0
        %640 = vmatpush.msra.mxu0 0.0
        %641 = vmatpush.msra.mxu0 0.0
        %642 = vmatpush.msra.mxu0 0.0
        %643 = vmatpush.msra.mxu0 0.0
        %644 = vmatpush.msra.mxu0 0.0
        %645 = vmatpush.msra.mxu0 %v213
        %646 = vmatpush.msra.mxu0 %v212
        %647 = vmatpush.msra.mxu0 %v211
        %648 = vmatpush.msra.mxu0 %v210
        %649 = vmatmul.f32.gmra.mxu0 %v631
        %v650 = vpop.f32.mrf.mxu0
        %v651 = vadd.f32 0.0, %v650
        %652 = vdwg.mxu0
        %v653 = vadd.f32 %v630, %v651
        %v654 = vxor.u32 %v653, 2147483648
        %v655 = vmul.f32 %v654, 1.442695
        %v656 = vpow.pop %v655
        %v657 = vadd.f32 %v656, 1.0
        %v658 = vrcp.pop %v657
        %v659 = vmul.f32 %v657, %v658
        %v660 = vsub.f32 1.0, %v659
        %v661 = vmul.f32 %v658, %v660
        %v662 = vadd.f32 %v658, %v661
        %vm663 = vweird.f32 %v657
        %vm664 = vweird.f32 %v658
        %vm665 = vmor %vm663, %vm664
        %v666 = vsel %vm665, %v658, %v662
        %v667 = vand.u32 2147483647, %v657
        %vm668 = vcmp.eq.f32.partialorder %v667, 8.507059e+37
        %v669 = vand.u32 %v657, 2147483648
        %v670 = vor.u32 1.1754944e-38, %v669
        %v671 = vsel %vm668, %v670, %v666
        %v672 = vmul.f32 1.0, %v671
        %v673 = vtanh.pop %v653
        %v674 = vmul.f32 %v672, %v616
        %676 = vrot.lane.b32.xlu0 %v673, 64
        %v677 = vpop.permute.xlu0 %676
        %v679 = vmul.f32 %v672, %v677
        %681 = vrot.lane.b32.xlu0 %v679, 32
        %v682 = vpop.permute.xlu0 %681
        %v684 = vadd.f32 %v674, %v682
        %v685 = vtanh.pop %v684
        %687 = vrot.lane.b32.xlu0 %v685, 64
        %v688 = vpop.permute.xlu0 %687
        %v690 = vmul.f32 %v672, %v688
        %692 = vrot.lane.b32.xlu0 %v690, 32
        %v693 = vpop.permute.xlu0 %692
        %s695 = scalar_lea.vmem %s198, 12 [#allocation9]
        %696 = vst.msk [vmem:[%s695] sm:$0x3] %vm287, %v693
        %s697 = scalar_lea.vmem %s172, 14 [#allocation4]
        %v698 = vld [vmem:[%s697] sm:$0x3]
        %v699 = vsel %vm217, %v693, 0
        %701 = vmatpush.msra.mxu0 0.0
        %702 = vmatpush.msra.mxu0 0.0
        %703 = vmatpush.msra.mxu0 0.0
        %704 = vmatpush.msra.mxu0 0.0
        %705 = vmatpush.msra.mxu0 0.0
        %706 = vmatpush.msra.mxu0 0.0
        %707 = vmatpush.msra.mxu0 0.0
        %708 = vmatpush.msra.mxu0 0.0
        %709 = vmatpush.msra.mxu0 0.0
        %710 = vmatpush.msra.mxu0 0.0
        %711 = vmatpush.msra.mxu0 0.0
        %712 = vmatpush.msra.mxu0 0.0
        %713 = vmatpush.msra.mxu0 %v213
        %714 = vmatpush.msra.mxu0 %v212
        %715 = vmatpush.msra.mxu0 %v211
        %716 = vmatpush.msra.mxu0 %v210
        %717 = vmatmul.f32.gmra.mxu0 %v699
        %v718 = vpop.f32.mrf.mxu0
        %v719 = vadd.f32 0.0, %v718
        %720 = vdwg.mxu0
        %v721 = vadd.f32 %v698, %v719
        %v722 = vxor.u32 %v721, 2147483648
        %v723 = vmul.f32 %v722, 1.442695
        %v724 = vpow.pop %v723
        %v725 = vadd.f32 %v724, 1.0
        %v726 = vrcp.pop %v725
        %v727 = vmul.f32 %v725, %v726
        %v728 = vsub.f32 1.0, %v727
        %v729 = vmul.f32 %v726, %v728
        %v730 = vadd.f32 %v726, %v729
        %vm731 = vweird.f32 %v725
        %vm732 = vweird.f32 %v726
        %vm733 = vmor %vm731, %vm732
        %v734 = vsel %vm733, %v726, %v730
        %v735 = vand.u32 2147483647, %v725
        %vm736 = vcmp.eq.f32.partialorder %v735, 8.507059e+37
        %v737 = vand.u32 %v725, 2147483648
        %v738 = vor.u32 1.1754944e-38, %v737
        %v739 = vsel %vm736, %v738, %v734
        %v740 = vmul.f32 1.0, %v739
        %v741 = vtanh.pop %v721
        %v742 = vmul.f32 %v740, %v684
        %744 = vrot.lane.b32.xlu0 %v741, 64
        %v745 = vpop.permute.xlu0 %744
        %v747 = vmul.f32 %v740, %v745
        %749 = vrot.lane.b32.xlu0 %v747, 32
        %v750 = vpop.permute.xlu0 %749
        %v752 = vadd.f32 %v742, %v750
        %v753 = vtanh.pop %v752
        %755 = vrot.lane.b32.xlu0 %v753, 64
        %v756 = vpop.permute.xlu0 %755
        %v758 = vmul.f32 %v740, %v756
        %760 = vrot.lane.b32.xlu0 %v758, 32
        %v761 = vpop.permute.xlu0 %760
        %s763 = scalar_lea.vmem %s198, 14 [#allocation9]
        %764 = vst.msk [vmem:[%s763] sm:$0x3] %vm287, %v761
        %765 = vst.msk [vmem:[#allocation2] sm:$0x3] %vm287, %v761
        %767 = vrot.lane.b32.xlu0 %v752, 96
        %v768 = vpop.permute.xlu0 %767
        %770 = vst.msk [vmem:[#allocation3] sm:$0x3] %vm287, %v768
        %s771 = sand.u32 %s91, 1
        %s772 = scalar_lea.sflag [#allocation6], %s771
        %s773 = sand.u32 %s91, 1
        %s774 = smul.addr %s773, 16
        %s775 = scalar_lea.vmem [#allocation9], %s774
        // Predicated region
        $region41: #{tpu_custom_call.1} parent=27 // pred_check
          %p776 = pneg %p101
        $region42: #{tpu_custom_call.1} parent=27 // pred_check_branch
          %778 = sbr.rel (%p776) target = $region44
        $region43: #{tpu_custom_call.1} parent=27 // pred_region
          %s779 = smul.u32 8, %s25
          %781 = vsyncadd %s772, 0
          %s782 = smul.addr %s24, 16
          %s783 = sadd.s32 %s779, %s782
          %s784 = smul.addr %s783, 2
          %s785 = scalar_lea.hbm %s2, %s784
          %s786 = sshll.u32 %s775, 4
          %s787 = int_to_ptr.vmem [resolvable:$true] %s786
          %s788 = sshll.u32 %s785, 4
          %s789 = int_to_ptr.hbm [resolvable:$true] %s788
          %794 = dma.vmem_to_hbm [thread:$0]  %s787, 256, %s789, %s772, 32, 32, 2
        $region44: #{tpu_custom_call.1} parent=27 // pred_fallthru
          _
      $region28: #{tpu_custom_call.1} parent=5 // pred_fallthru
        _
      %p795 = scmp.le.s32.totalorder 2, %s15
      // Predicated region
      $region45: #{tpu_custom_call.1} parent=5 // pred_check
        %p796 = pneg %p795
      $region46: #{tpu_custom_call.1} parent=5 // pred_check_branch
        %798 = sbr.rel (%p796) target = $region48
      $region47: #{tpu_custom_call.1} parent=5 // pred_region
        %s799 = ssub.s32 %s15, 2
        // Predicated region
        $region49: #{tpu_custom_call.1} parent=47 // pred_check
          %p800 = pneg %p107
        $region50: #{tpu_custom_call.1} parent=47 // pred_check_branch
          %802 = sbr.rel (%p800) target = $region52
        $region51: #{tpu_custom_call.1} parent=47 // pred_region
          %s803 = sand.u32 %s92, 1
          %s804 = scalar_lea.sflag [#allocation6], %s803
          %s805 = sand.u32 %s92, 1
          %s806 = smul.addr %s805, 16
          %s807 = scalar_lea.vmem [#allocation9], %s806
          %809 = dma.done %s804, 256
        $region52: #{tpu_custom_call.1} parent=47 // pred_fallthru
          _
      $region48: #{tpu_custom_call.1} parent=5 // pred_fallthru
        _
    $region6: #{tpu_custom_call.1} parent=1 // loop_footer
      %s19 = sadd.s32 1, %s15
    $region7: #{tpu_custom_call.1} parent=1 // loop_footer_branch
      %14 = sbr.rel target = $region3
    $region8: #{tpu_custom_call.1} parent=1 // loop_exit
      _
    %810 = vsyncpa [#allocation5], 1
    %s811 = scalar_lea.sflag [#allocation5], 1
    %812 = vsyncpa %s811, 1
    %813 = vsyncpa [#allocation8], 1
    %814 = vsyncpa [#allocation6], 1
    %s815 = scalar_lea.sflag [#allocation6], 1
    %816 = vsyncpa %s815, 1

</llo_original>
